<compile_context>
chip_gen: v7x
topology: tpu7x:2x2x1
jax: 0.10.0
libtpu: 0.0.40
codegen_flags: <defaults>
</compile_context>

<pallas_src>
import functools

import jax
import jax.numpy as jnp
from jax.experimental import pallas as pl
from jax.experimental.pallas import tpu as pltpu


def mlp_kernel(x_ref, w1_ref, b1_ref, w2_ref, b2_ref, o_ref):
    # x_ref:  (tm, in_feat)
    # w1_ref: (in_feat, mid_feat), b1_ref: (1, mid_feat)
    # w2_ref: (mid_feat, out_feat), b2_ref: (1, out_feat)
    # bf16 operands, f32 accumulation -> full-rate MXU on v6e/v7x.
    x = x_ref[...].astype(jnp.bfloat16)
    w1 = w1_ref[...].astype(jnp.bfloat16)
    h = jnp.dot(x, w1, preferred_element_type=jnp.float32) + b1_ref[...]

    # x * sigmoid(x), all in f32.  exp and the approximate reciprocal both run
    # on the EUP slot (otherwise idle here), so no vector divide on the VALU.
    h = h * pl.reciprocal(1.0 + jnp.exp(-h), approx=True)

    # dropout_p = 0.0 -> drop1/drop2 are identity; nothing to do.
    w2 = w2_ref[...].astype(jnp.bfloat16)
    o = jnp.dot(h.astype(jnp.bfloat16), w2,
                preferred_element_type=jnp.float32) + b2_ref[...]
    o_ref[...] = o.astype(o_ref.dtype)


def mlp_pallas(x, w1, b1, w2, b2, *, tm=None):
    """x: (M, in_feat) float32. Returns (M, out_feat)."""
    M, in_feat = x.shape
    mid_feat = w1.shape[1]
    out_feat = w2.shape[1]

    if tm is None:
        # Biggest row tile up to the measured knee of the tile-size curve
        # (512 rows); for tiny M this becomes a single grid step.
        tm = min(512, max(8, M))
    tm = ((tm + 7) // 8) * 8          # sublane-aligned row tile

    # Pad the row dimension so any tm works; pad rows are sliced off below.
    M_pad = pl.cdiv(M, tm) * tm
    if M_pad != M:
        x = jnp.pad(x, ((0, M_pad - M), (0, 0)))

    grid = (M_pad // tm,)

    flops = 2 * M_pad * (in_feat * mid_feat + mid_feat * out_feat)
    transcendentals = M_pad * mid_feat  # one exp per hidden element
    bytes_accessed = 4 * (M_pad * in_feat + M_pad * out_feat
                          + in_feat * mid_feat + mid_feat
                          + mid_feat * out_feat + out_feat)

    out = pl.pallas_call(
        mlp_kernel,
        out_shape=jax.ShapeDtypeStruct((M_pad, out_feat), x.dtype),
        grid_spec=pltpu.PrefetchScalarGridSpec(
            num_scalar_prefetch=0,
            grid=grid,
            in_specs=[
                pl.BlockSpec((tm, in_feat), lambda i: (i, 0)),
                # Weights/biases resident in VMEM across the whole row grid.
                pl.BlockSpec((in_feat, mid_feat), lambda i: (0, 0)),
                pl.BlockSpec((1, mid_feat), lambda i: (0, 0)),
                pl.BlockSpec((mid_feat, out_feat), lambda i: (0, 0)),
                pl.BlockSpec((1, out_feat), lambda i: (0, 0)),
            ],
            out_specs=pl.BlockSpec((tm, out_feat), lambda i: (i, 0)),
        ),
        compiler_params=pltpu.CompilerParams(
            dimension_semantics=("parallel",),
        ),
        cost_estimate=pl.CostEstimate(
            flops=flops,
            transcendentals=transcendentals,
            bytes_accessed=bytes_accessed,
        ),
    )(x, w1, b1, w2, b2)

    return out[:M]
    # TODO(synk): at transformer scale on v7x (64 MiB VMEM) the whole-weight
    # resident specs must be re-tiled with a mid_feat grid axis + accumulator,
    # and an out_feat < 128 output should be presented lane-dense (>=128 lanes)
    # via a wrapper-side reshape to avoid masked partial stores.


def mlp_forward(x_bsd, w1, b1, w2, b2):
    B, S, D = x_bsd.shape
    x2d = x_bsd.reshape(B * S, D)
    out2d = mlp_pallas(x2d, w1, b1, w2, b2)
    return out2d.reshape(B, S, w2.shape[1])


if __name__ == "__main__":
    key = jax.random.PRNGKey(0)
    k_x, k_w1, k_b1, k_w2, k_b2 = jax.random.split(key, 5)

    # Shapes implied by MLP(in_feat=32, mlp_ratio=1.5): mid=48, out=32
    B, S, in_feat = 2, 8, 32
    mlp_ratio = 1.5
    mid_feat = int(in_feat * mlp_ratio)   # 48
    out_feat = in_feat                    # out_feat=0 -> in_feat
    init_std = 1e-5

    x = jax.random.normal(k_x, (B, S, in_feat), dtype=jnp.float32)
    # nn.init.normal_(std=1e-5) for both weights and biases
    w1 = init_std * jax.random.normal(k_w1, (in_feat, mid_feat), dtype=jnp.float32)
    b1 = init_std * jax.random.normal(k_b1, (1, mid_feat), dtype=jnp.float32)
    w2 = init_std * jax.random.normal(k_w2, (mid_feat, out_feat), dtype=jnp.float32)
    b2 = init_std * jax.random.normal(k_b2, (1, out_feat), dtype=jnp.float32)

    out = mlp_forward(x, w1, b1, w2, b2)
    out = jax.block_until_ready(out)

    # Pure-JAX f32 reference (kernel uses bf16 matmul operands + approx
    # reciprocal, so allow a modest relative tolerance).
    h_ref = x @ w1 + b1[0]
    h_ref = h_ref * jax.nn.sigmoid(h_ref)
    out_ref = h_ref @ w2 + b2[0]
    assert jnp.allclose(out, out_ref, atol=1e-6, rtol=1e-3), (
        float(jnp.max(jnp.abs(out - out_ref))))

    # TODO(synk): dropout_p defaults to 0.0; nonzero training-mode dropout would
    # need pltpu.prng_seed + pltpu.stateful_bernoulli inside the kernel.
    print("KERNEL_OK")
</pallas_src>

<mosaic_0001>
module attributes {stable_mosaic.version = 11 : i64} {
  func.func @mlp_kernel(%arg0: i32, %arg1: memref<16x32xf32, #tpu.memory_space<vmem>>, %arg2: memref<32x48xf32, #tpu.memory_space<vmem>>, %arg3: memref<1x48xf32, #tpu.memory_space<vmem>>, %arg4: memref<48x32xf32, #tpu.memory_space<vmem>>, %arg5: memref<1x32xf32, #tpu.memory_space<vmem>>, %arg6: memref<16x32xf32, #tpu.memory_space<vmem>>) attributes {dimension_semantics = [#tpu.dimension_semantics<parallel>], iteration_bounds = array<i64: 1>, scalar_prefetch = 0 : i64, scratch_operands = 0 : i64, tpu.core_type = #tpu.core_type<tc>, window_params = [{transform_indices = @transform_0, window_bounds = array<i64: 16, 32>}, {pipeline_mode = #tpu.pipeline_mode<synchronous>, transform_indices = @transform_1, window_bounds = array<i64: 32, 48>}, {pipeline_mode = #tpu.pipeline_mode<synchronous>, transform_indices = @transform_2, window_bounds = array<i64: 1, 48>}, {pipeline_mode = #tpu.pipeline_mode<synchronous>, transform_indices = @transform_3, window_bounds = array<i64: 48, 32>}, {pipeline_mode = #tpu.pipeline_mode<synchronous>, transform_indices = @transform_4, window_bounds = array<i64: 1, 32>}, {transform_indices = @transform_5, window_bounds = array<i64: 16, 32>}]} {
    %c0 = arith.constant 0 : index
    %c0_0 = arith.constant 0 : index
    %0 = vector.load %arg1[%c0, %c0_0] : memref<16x32xf32, #tpu.memory_space<vmem>>, vector<16x32xf32>
    %1 = arith.truncf %0 : vector<16x32xf32> to vector<16x32xbf16>
    %c0_1 = arith.constant 0 : index
    %c0_2 = arith.constant 0 : index
    %2 = vector.load %arg2[%c0_1, %c0_2] : memref<32x48xf32, #tpu.memory_space<vmem>>, vector<32x48xf32>
    %3 = arith.truncf %2 : vector<32x48xf32> to vector<32x48xbf16>
    %cst = arith.constant dense<0.000000e+00> : vector<16x48xf32>
    %4 = tpu.matmul %1, %3, %cst {dimension_numbers = #tpu.dot_dimension_numbers<[1], [0], [0], [1], [0, 0, 1, 1], [], []>} : vector<16x32xbf16>, vector<32x48xbf16>, vector<16x48xf32> -> vector<16x48xf32>
    %c0_3 = arith.constant 0 : index
    %c0_4 = arith.constant 0 : index
    %5 = vector.load %arg3[%c0_3, %c0_4] : memref<1x48xf32, #tpu.memory_space<vmem>>, vector<1x48xf32>
    %6 = vector.broadcast %5 : vector<1x48xf32> to vector<16x48xf32>
    %7 = arith.addf %4, %6 : vector<16x48xf32>
    %cst_5 = arith.constant 0.000000e+00 : f32
    %8 = vector.broadcast %cst_5 : f32 to vector<16x48xf32>
    %9 = arith.subf %8, %7 : vector<16x48xf32>
    %10 = math.exp %9 : vector<16x48xf32>
    %cst_6 = arith.constant 1.000000e+00 : f32
    %11 = vector.broadcast %cst_6 : f32 to vector<16x48xf32>
    %12 = arith.addf %11, %10 : vector<16x48xf32>
    %13 = tpu.reciprocal %12 {approx = true} : vector<16x48xf32> -> vector<16x48xf32>
    %14 = arith.mulf %7, %13 : vector<16x48xf32>
    %c0_7 = arith.constant 0 : index
    %c0_8 = arith.constant 0 : index
    %15 = vector.load %arg4[%c0_7, %c0_8] : memref<48x32xf32, #tpu.memory_space<vmem>>, vector<48x32xf32>
    %16 = arith.truncf %15 : vector<48x32xf32> to vector<48x32xbf16>
    %17 = arith.truncf %14 : vector<16x48xf32> to vector<16x48xbf16>
    %cst_9 = arith.constant dense<0.000000e+00> : vector<16x32xf32>
    %18 = tpu.matmul %17, %16, %cst_9 {dimension_numbers = #tpu.dot_dimension_numbers<[1], [0], [0], [1], [0, 0, 1, 1], [], []>} : vector<16x48xbf16>, vector<48x32xbf16>, vector<16x32xf32> -> vector<16x32xf32>
    %c0_10 = arith.constant 0 : index
    %c0_11 = arith.constant 0 : index
    %19 = vector.load %arg5[%c0_10, %c0_11] : memref<1x32xf32, #tpu.memory_space<vmem>>, vector<1x32xf32>
    %20 = vector.broadcast %19 : vector<1x32xf32> to vector<16x32xf32>
    %21 = arith.addf %18, %20 : vector<16x32xf32>
    %c0_12 = arith.constant 0 : index
    %c0_13 = arith.constant 0 : index
    %22 = vector.load %arg6[%c0_12, %c0_13] : memref<16x32xf32, #tpu.memory_space<vmem>>, vector<16x32xf32>
    tpu.vector_store %arg6[%c0_12, %c0_13], %21 {strides = array<i32>} : memref<16x32xf32, #tpu.memory_space<vmem>>, vector<16x32xf32>,
    return
  }
  func.func @transform_0(%arg0: i32) -> (i32, i32) {
    %c0_i32 = arith.constant 0 : i32
    %c0_i32_0 = arith.constant 0 : i32
    return %arg0, %c0_i32 : i32, i32
  }
  func.func @transform_1(%arg0: i32) -> (i32, i32) {
    %c0_i32 = arith.constant 0 : i32
    %c0_i32_0 = arith.constant 0 : i32
    %c0_i32_1 = arith.constant 0 : i32
    return %c0_i32, %c0_i32_0 : i32, i32
  }
  func.func @transform_2(%arg0: i32) -> (i32, i32) {
    %c0_i32 = arith.constant 0 : i32
    %c0_i32_0 = arith.constant 0 : i32
    %c0_i32_1 = arith.constant 0 : i32
    return %c0_i32, %c0_i32_0 : i32, i32
  }
  func.func @transform_3(%arg0: i32) -> (i32, i32) {
    %c0_i32 = arith.constant 0 : i32
    %c0_i32_0 = arith.constant 0 : i32
    %c0_i32_1 = arith.constant 0 : i32
    return %c0_i32, %c0_i32_0 : i32, i32
  }
  func.func @transform_4(%arg0: i32) -> (i32, i32) {
    %c0_i32 = arith.constant 0 : i32
    %c0_i32_0 = arith.constant 0 : i32
    %c0_i32_1 = arith.constant 0 : i32
    return %c0_i32, %c0_i32_0 : i32, i32
  }
  func.func @transform_5(%arg0: i32) -> (i32, i32) {
    %c0_i32 = arith.constant 0 : i32
    %c0_i32_0 = arith.constant 0 : i32
    return %arg0, %c0_i32 : i32, i32
  }
}

</mosaic_0001>

<llo_original>
// kernel: tpu_custom_call.1
$region0: #{tpu_custom_call.1}
  #allocation0 [shape = 'u32[]', space=smem, size = 0x4, offset = 0x4, fixed_abs, tag = 'smem constant byte address 0x4 - core index']
  #allocation1 [shape = 'u32[144,128]{1,0:T(1,128)}', space=vmem, size = 0x12000, scoped, tag = 'internal scratch']
  %s0 = inlined_call_operand.vmem [shape: f32[16,32], index: 0, kind: input, shape index: {}]
  %s1 = inlined_call_operand.vmem [shape: f32[32,48], index: 1, kind: input, shape index: {}]
  %s2 = inlined_call_operand.vmem [shape: f32[1,48], index: 2, kind: input, shape index: {}]
  %s3 = inlined_call_operand.vmem [shape: f32[48,32], index: 3, kind: input, shape index: {}]
  %s4 = inlined_call_operand.vmem [shape: f32[1,32], index: 4, kind: input, shape index: {}]
  %s5 = inlined_call_operand.hbm [shape: f32[16,32], index: 5, kind: output, shape index: {}]
  %s6 = sld [smem:[#allocation0]]
  $region30: #{tpu_custom_call.1} parent=0
    _
  %s8 = ssub.s32 1, %s6
  %s9 = scalar_select 0, %s8, %s6
  $region1: #{tpu_custom_call.1} parent=0
    #allocation2 [shape = 'u8[8192]{0}', space=vmem, size = 0x2000, scoped, tag = 'output window, operand 0, single buffered']
    #allocation3 [shape = 's32[1]{0}', space=sflag, size = 0x4, scoped, tag = 'scoped memory for tpu_custom_call.1']
    %10 = vsyncpa [#allocation3], 0
    // Predicated region
    $region2: #{tpu_custom_call.1} parent=1 // pred_check
      _
    $region3: #{tpu_custom_call.1} parent=1 // pred_check_branch
      %12 = sbr.rel (0) target = $region5
    $region4: #{tpu_custom_call.1} parent=1 // pred_region
      _
    $region5: #{tpu_custom_call.1} parent=1 // pred_fallthru
      _
    // Predicated region
    $region6: #{tpu_custom_call.1} parent=1 // pred_check
      _
    $region7: #{tpu_custom_call.1} parent=1 // pred_check_branch
      %14 = sbr.rel (0) target = $region9
    $region8: #{tpu_custom_call.1} parent=1 // pred_region
      _
    $region9: #{tpu_custom_call.1} parent=1 // pred_fallthru
      _
    // Predicated region
    $region10: #{tpu_custom_call.1} parent=1 // pred_check
      _
    $region11: #{tpu_custom_call.1} parent=1 // pred_check_branch
      %16 = sbr.rel (0) target = $region13
    $region12: #{tpu_custom_call.1} parent=1 // pred_region
      _
    $region13: #{tpu_custom_call.1} parent=1 // pred_fallthru
      _
    // Predicated region
    $region14: #{tpu_custom_call.1} parent=1 // pred_check
      _
    $region15: #{tpu_custom_call.1} parent=1 // pred_check_branch
      %18 = sbr.rel (0) target = $region17
    $region16: #{tpu_custom_call.1} parent=1 // pred_region
      _
    $region17: #{tpu_custom_call.1} parent=1 // pred_fallthru
      _
    // Predicated region
    $region18: #{tpu_custom_call.1} parent=1 // pred_check
      _
    $region19: #{tpu_custom_call.1} parent=1 // pred_check_branch
      %20 = sbr.rel (0) target = $region21
    $region20: #{tpu_custom_call.1} parent=1 // pred_region
      _
    $region21: #{tpu_custom_call.1} parent=1 // pred_fallthru
      _
    %v22 = vld [vmem:[%s0] sm:$0xff]
    %v23 = vld [vmem:[%s0 + $0x8] sm:$0xff]
    %v24 = vpack.c.bf16 %v23, %v22
    %v25 = vld [vmem:[%s1] sm:$0xff]
    %v26 = vld [vmem:[%s1 + $0x8] sm:$0xff]
    %v27 = vld [vmem:[%s1 + $0x10] sm:$0xff]
    %v28 = vld [vmem:[%s1 + $0x18] sm:$0xff]
    %v29 = vpack.c.bf16 %v26, %v25
    %v30 = vpack.c.bf16 %v28, %v27
    %v31 = vld [vmem:[%s2] sm:$0x1]
    %v33 = vlaneseq
    %v34 = vshrl.u32 %v33, 7
    %v35 = vsub.s32 0, %v34
    %v36 = vrot.slane %v31, %v35
    %vm38 = vcmask 261120
    %v40 = vsel %vm38, %v24, 0
    %42 = vmatprep.subr.bf16.mxu0 0
    %43 = vmatpush1.bf16.msra.mxu0 %v29
    %44 = vmatprep.subr.bf16.mxu0 0
    %45 = vmatpush1.bf16.msra.mxu0 %v30
    %46 = vmatprep.subr.bf16.mxu0 0
    %47 = vmatpush1.bf16.msra.mxu0 0
    %48 = vmatprep.subr.bf16.mxu0 0
    %49 = vmatpush1.bf16.msra.mxu0 0
    %50 = vmatprep.subr.bf16.mxu0 0
    %51 = vmatpush1.bf16.msra.mxu0 0
    %52 = vmatprep.subr.bf16.mxu0 0
    %53 = vmatpush1.bf16.msra.mxu0 0
    %54 = vmatprep.subr.bf16.mxu0 0
    %55 = vmatpush1.bf16.msra.mxu0 0
    %56 = vmatprep.subr.bf16.mxu0 0
    %57 = vmatpush1.bf16.msra.mxu0 0
    %58 = vmatprep.subr.bf16.mxu0 0
    %59 = vmatpush1.bf16.msra.mxu0 0
    %60 = vmatprep.subr.bf16.mxu0 0
    %61 = vmatpush1.bf16.msra.mxu0 0
    %62 = vmatprep.subr.bf16.mxu0 0
    %63 = vmatpush1.bf16.msra.mxu0 0
    %64 = vmatprep.subr.bf16.mxu0 0
    %65 = vmatpush1.bf16.msra.mxu0 0
    %66 = vmatprep.subr.bf16.mxu0 0
    %67 = vmatpush1.bf16.msra.mxu0 0
    %68 = vmatprep.subr.bf16.mxu0 0
    %69 = vmatpush1.bf16.msra.mxu0 0
    %70 = vmatprep.subr.bf16.mxu0 0
    %71 = vmatpush1.bf16.msra.mxu0 0
    %72 = vmatprep.subr.bf16.mxu0 0
    %73 = vmatpush1.bf16.msra.mxu0 0
    %74 = vmatprep.mubr.bf16.mxu0 0
    %75 = vmatmul.mubr.bf16.gmra.mrb[0].mxu0 %v40
    %v76 = vpop.f32.mrb[0].mxu0
    %v77 = vadd.f32 %v36, %v76
    %v78 = vpop.f32.mrb[0].mxu0
    %v79 = vpop.f32.mrb[0].mxu0
    %v80 = vadd.f32 %v36, %v79
    %v81 = vpop.f32.mrb[0].mxu0
    %82 = vdwg.mxu0
    %v83 = vsub.f32 0.0, %v77
    %v84 = vsub.f32 0.0, %v80
    %v85 = vmul.f32 %v83, 1.442695
    %v86 = vpow.pop %v85
    %v87 = vmul.f32 %v84, 1.442695
    %v88 = vpow.pop %v87
    %v89 = vadd.f32 %v86, 1.0
    %v90 = vadd.f32 %v88, 1.0
    %v91 = vrcp.pop %v89
    %v92 = vrcp.pop %v90
    %v93 = vmul.f32 %v77, %v91
    %v94 = vmul.f32 %v80, %v92
    %v95 = vld [vmem:[%s3] sm:$0xff]
    %v96 = vld [vmem:[%s3 + $0x8] sm:$0xff]
    %v97 = vld [vmem:[%s3 + $0x10] sm:$0xff]
    %v98 = vld [vmem:[%s3 + $0x18] sm:$0xff]
    %v99 = vld [vmem:[%s3 + $0x20] sm:$0xff]
    %v100 = vld [vmem:[%s3 + $0x28] sm:$0xff]
    %v101 = vpack.c.bf16 %v96, %v95
    %v102 = vpack.c.bf16 %v98, %v97
    %v103 = vpack.c.bf16 %v100, %v99
    %v104 = vpack.c.bf16 %v94, %v93
    %v105 = vld [vmem:[%s4] sm:$0x1]
    %v107 = vlaneseq
    %v108 = vshrl.u32 %v107, 7
    %v109 = vsub.s32 0, %v108
    %v110 = vrot.slane %v105, %v109
    %vm112 = vcmask 392192
    %v114 = vsel %vm112, %v104, 0
    %116 = vmatprep.subr.bf16.mxu0 0
    %117 = vmatpush1.bf16.msra.mxu0 %v101
    %118 = vmatprep.subr.bf16.mxu0 0
    %119 = vmatpush1.bf16.msra.mxu0 %v102
    %120 = vmatprep.subr.bf16.mxu0 0
    %121 = vmatpush1.bf16.msra.mxu0 %v103
    %122 = vmatprep.subr.bf16.mxu0 0
    %123 = vmatpush1.bf16.msra.mxu0 0
    %124 = vmatprep.subr.bf16.mxu0 0
    %125 = vmatpush1.bf16.msra.mxu0 0
    %126 = vmatprep.subr.bf16.mxu0 0
    %127 = vmatpush1.bf16.msra.mxu0 0
    %128 = vmatprep.subr.bf16.mxu0 0
    %129 = vmatpush1.bf16.msra.mxu0 0
    %130 = vmatprep.subr.bf16.mxu0 0
    %131 = vmatpush1.bf16.msra.mxu0 0
    %132 = vmatprep.subr.bf16.mxu0 0
    %133 = vmatpush1.bf16.msra.mxu0 0
    %134 = vmatprep.subr.bf16.mxu0 0
    %135 = vmatpush1.bf16.msra.mxu0 0
    %136 = vmatprep.subr.bf16.mxu0 0
    %137 = vmatpush1.bf16.msra.mxu0 0
    %138 = vmatprep.subr.bf16.mxu0 0
    %139 = vmatpush1.bf16.msra.mxu0 0
    %140 = vmatprep.subr.bf16.mxu0 0
    %141 = vmatpush1.bf16.msra.mxu0 0
    %142 = vmatprep.subr.bf16.mxu0 0
    %143 = vmatpush1.bf16.msra.mxu0 0
    %144 = vmatprep.subr.bf16.mxu0 0
    %145 = vmatpush1.bf16.msra.mxu0 0
    %146 = vmatprep.subr.bf16.mxu0 0
    %147 = vmatpush1.bf16.msra.mxu0 0
    %148 = vmatprep.mubr.bf16.mxu0 0
    %149 = vmatmul.mubr.bf16.gmra.mrb[0].mxu0 %v114
    %v150 = vpop.f32.mrb[0].mxu0
    %v151 = vadd.f32 %v110, %v150
    %v152 = vpop.f32.mrb[0].mxu0
    %v153 = vpop.f32.mrb[0].mxu0
    %v154 = vadd.f32 %v110, %v153
    %v155 = vpop.f32.mrb[0].mxu0
    %156 = vdwg.mxu0
    %157 = vst.msk [vmem:[#allocation2] sm:$0xff] %vm38, %v151
    %158 = vst.msk [vmem:[#allocation2 + $0x8] sm:$0xff] %vm38, %v154
    // Predicated region
    $region22: #{tpu_custom_call.1} parent=1 // pred_check
      _
    $region23: #{tpu_custom_call.1} parent=1 // pred_check_branch
      %160 = sbr.rel (0) target = $region25
    $region24: #{tpu_custom_call.1} parent=1 // pred_region
      %s162 = ssub.s32 256, 256
      %163 = vsyncadd [#allocation3], %s162
      %s164 = sshll.u32 [#allocation2], 4
      %s165 = int_to_ptr.vmem [resolvable:$true] %s164
      %170 = dma.vmem_to_hbm [thread:$0]  %s165, 256, %s5, [#allocation3], 128, 128, 8
    $region25: #{tpu_custom_call.1} parent=1 // pred_fallthru
      _
    // Predicated region
    $region26: #{tpu_custom_call.1} parent=1 // pred_check
      _
    $region27: #{tpu_custom_call.1} parent=1 // pred_check_branch
      %172 = sbr.rel (0) target = $region29
    $region28: #{tpu_custom_call.1} parent=1 // pred_region
      %173 = dma.done [#allocation3], 256
    $region29: #{tpu_custom_call.1} parent=1 // pred_fallthru
      _
    %174 = vsyncpa [#allocation3], 1

</llo_original>
